<compile_context>
chip_gen: v7x
topology: tpu7x:2x2x1
jax: 0.10.0
libtpu: 0.0.40
codegen_flags: <defaults>
</compile_context>

<pallas_src>
import functools
import math

import jax
import jax.numpy as jnp
from jax.experimental import pallas as pl
from jax.experimental.pallas import tpu as pltpu


def _pe_add_kernel(x_ref, pe_ref, o_ref, *, batch: int):
    # x_ref / o_ref: (tile_s, batch*d_model) lane-dense tiles.
    # pe_ref:        (tile_s, d_model).
    pe_tile = pe_ref[...]
    if batch == 1:
        pe_row = pe_tile
    else:
        # Tile pe along the lane axis so it lines up with the flattened
        # (batch, d_model) layout of each x row.  Lane-concat is XLU/VPU-side
        # work that overlaps the (mem-bound) DMA traffic.
        pe_row = jnp.concatenate([pe_tile] * batch, axis=-1)
    o_ref[...] = x_ref[...] + pe_row


def make_positional_encoding_table(d_model: int, max_len: int, dtype=jnp.float32):
    """Same values as the PyTorch `pe` buffer, stored sublane-dense as
    (max_len, d_model) instead of (max_len, 1, d_model)."""
    position = jnp.arange(max_len, dtype=jnp.float32)[:, None]            # (max_len, 1)
    div_term = jnp.exp(
        jnp.arange(0, d_model, 2, dtype=jnp.float32) * (-math.log(10000.0) / d_model)
    )                                                                      # (d_model//2,)
    pe = jnp.zeros((max_len, d_model), dtype=jnp.float32)
    pe = pe.at[:, 0::2].set(jnp.sin(position * div_term))
    pe = pe.at[:, 1::2].set(jnp.cos(position * div_term))
    return pe.astype(dtype)


def _choose_tile_s(S: int, B: int, D: int, itemsize: int,
                   vmem_budget_bytes: int = 8 * 1024 * 1024) -> int:
    """Largest tile_s (multiple of 8, or S itself) such that the double-buffered
    x/out tiles plus the pe tiles stay well under the scoped-VMEM budget:
      (2 bufs x + 2 bufs out) * tS*(B*D) + 2 bufs pe * tS*D   bytes."""
    bytes_per_row = (4 * B * D + 2 * D) * itemsize
    tile_s = vmem_budget_bytes // max(bytes_per_row, 1)
    if tile_s >= S:
        return S                        # whole-S tile still fits comfortably
    tile_s = max(8, (tile_s // 8) * 8)  # sublane-aligned rows
    return min(tile_s, S)


def positional_encoding_forward(x: jax.Array, pe: jax.Array, *, tile_s=None) -> jax.Array:
    """out = x + pe[:x.shape[0]] (broadcast over batch); dropout eval-mode identity.

    x : (S, B, D)
    pe: (max_len, D)   -- sublane-dense 2-D table
    """
    S, B, D = x.shape
    pe_slice = pe[:S].astype(x.dtype)   # (S, D) — glue slicing/cast in plain JAX.
    x2 = x.reshape(S, B * D)            # free (contiguous) reshape -> lane-dense slab

    if tile_s is None:
        tile_s = _choose_tile_s(S, B, D, jnp.dtype(x.dtype).itemsize)
    # Block constraint: second-last dim of the 2-D blocks is tile_s, so it must
    # be a multiple of 8 (sublane) or equal to the full S extent.
    assert tile_s == S or tile_s % 8 == 0, "tile_s must be a multiple of 8 or == S"

    grid = (pl.cdiv(S, tile_s),)

    out2 = pl.pallas_call(
        functools.partial(_pe_add_kernel, batch=B),
        out_shape=jax.ShapeDtypeStruct((S, B * D), x.dtype),
        grid=grid,
        in_specs=[
            pl.BlockSpec((tile_s, B * D), lambda i: (i, 0)),  # x (flattened, lane-dense)
            pl.BlockSpec((tile_s, D), lambda i: (i, 0)),      # pe (small 2-D table)
        ],
        out_specs=pl.BlockSpec((tile_s, B * D), lambda i: (i, 0)),
        compiler_params=pltpu.CompilerParams(
            # Independent output tiles per grid step -> "parallel" lets v7x
            # shard grid steps across its 2 TensorCores; no-op on v5e/v6e.
            dimension_semantics=("parallel",),
            # Explicit scoped-VMEM limit, safe on all generations (v7x has
            # 64 MiB physical); tiles are budgeted to ~8 MiB total.
            vmem_limit_bytes=32 * 1024 * 1024,
        ),
        # NOTE: if the caller does not need x afterwards, adding
        # input_output_aliases={0: 0} saves the output HBM allocation.
    )(x2, pe_slice)
    return out2.reshape(S, B, D)


if __name__ == "__main__":
    # Small shapes consistent with the module; seq chosen so the grid has
    # several steps and the DMA pipeline is actually exercised.
    seq_len, batch, d_model, max_len = 64, 2, 32, 128

    key = jax.random.PRNGKey(0)
    x = jax.random.normal(key, (seq_len, batch, d_model), dtype=jnp.float32)

    pe = make_positional_encoding_table(d_model, max_len)

    out = positional_encoding_forward(x, pe, tile_s=16)  # grid = (4,)
    out = jax.block_until_ready(out)

    # Sanity check against a pure-JAX reference of the same forward.
    ref = x + pe[:seq_len][:, None, :]
    assert out.shape == (seq_len, batch, d_model)
    assert jnp.allclose(out, ref, atol=1e-6, rtol=1e-6)

    print("KERNEL_OK")
</pallas_src>

<mosaic_0001>
module attributes {stable_mosaic.version = 11 : i64} {
  func.func @_pe_add_kernel(%arg0: i32, %arg1: memref<16x64xf32, #tpu.memory_space<vmem>>, %arg2: memref<16x32xf32, #tpu.memory_space<vmem>>, %arg3: memref<16x64xf32, #tpu.memory_space<vmem>>) attributes {dimension_semantics = [#tpu.dimension_semantics<parallel>], iteration_bounds = array<i64: 4>, scalar_prefetch = 0 : i64, scratch_operands = 0 : i64, tpu.core_type = #tpu.core_type<tc>, window_params = [{transform_indices = @transform_0, window_bounds = array<i64: 16, 64>}, {transform_indices = @transform_1, window_bounds = array<i64: 16, 32>}, {transform_indices = @transform_2, window_bounds = array<i64: 16, 64>}]} {
    %c0 = arith.constant 0 : index
    %c0_0 = arith.constant 0 : index
    %0 = vector.load %arg2[%c0, %c0_0] : memref<16x32xf32, #tpu.memory_space<vmem>>, vector<16x32xf32>
    %1 = tpu.concatenate %0, %0 in 1 : vector<16x32xf32>, vector<16x32xf32> -> vector<16x64xf32>
    %c0_1 = arith.constant 0 : index
    %c0_2 = arith.constant 0 : index
    %2 = vector.load %arg1[%c0_1, %c0_2] : memref<16x64xf32, #tpu.memory_space<vmem>>, vector<16x64xf32>
    %3 = arith.addf %2, %1 : vector<16x64xf32>
    %c0_3 = arith.constant 0 : index
    %c0_4 = arith.constant 0 : index
    %4 = vector.load %arg3[%c0_3, %c0_4] : memref<16x64xf32, #tpu.memory_space<vmem>>, vector<16x64xf32>
    tpu.vector_store %arg3[%c0_3, %c0_4], %3 {strides = array<i32>} : memref<16x64xf32, #tpu.memory_space<vmem>>, vector<16x64xf32>,
    return
  }
  func.func @transform_0(%arg0: i32) -> (i32, i32) {
    %c0_i32 = arith.constant 0 : i32
    %c0_i32_0 = arith.constant 0 : i32
    return %arg0, %c0_i32 : i32, i32
  }
  func.func @transform_1(%arg0: i32) -> (i32, i32) {
    %c0_i32 = arith.constant 0 : i32
    %c0_i32_0 = arith.constant 0 : i32
    return %arg0, %c0_i32 : i32, i32
  }
  func.func @transform_2(%arg0: i32) -> (i32, i32) {
    %c0_i32 = arith.constant 0 : i32
    %c0_i32_0 = arith.constant 0 : i32
    return %arg0, %c0_i32 : i32, i32
  }
}

</mosaic_0001>

<llo_original>
// kernel: tpu_custom_call.1
$region0: #{tpu_custom_call.1}
  #allocation0 [shape = 'u32[]', space=smem, size = 0x4, offset = 0x4, fixed_abs, tag = 'smem constant byte address 0x4 - core index']
  #allocation1 [shape = 'u32[144,128]{1,0:T(1,128)}', space=vmem, size = 0x12000, scoped, tag = 'internal scratch']
  %s0 = inlined_call_operand.vmem [shape: f32[64,64], index: 0, kind: input, shape index: {}]
  %s1 = inlined_call_operand.vmem [shape: f32[64,32], index: 1, kind: input, shape index: {}]
  %s2 = inlined_call_operand.hbm [shape: f32[64,64], index: 2, kind: output, shape index: {}]
  %s3 = sld [smem:[#allocation0]]
  $region41: #{tpu_custom_call.1} parent=0
    _
  %s5 = ssub.s32 1, %s3
  %s6 = scalar_select 0, %s5, %s3
  $region1: #{tpu_custom_call.1} parent=0
    #allocation2 [shape = 'u8[16384]{0}', space=vmem, size = 0x4000, scoped, tag = 'output window, operand 0']
    #allocation3 [shape = 's32[2]{0}', space=sflag, size = 0x8, scoped, tag = 'scoped memory for tpu_custom_call.1']
    %7 = vsyncpa [#allocation3], 0
    %s8 = scalar_lea.sflag [#allocation3], 1
    %9 = vsyncpa %s8, 0
    loop: start=0, step=1, limit=6
    $region2: #{tpu_custom_call.1} parent=1 // loop_pre_header
      _
    $region3: #{tpu_custom_call.1} parent=1 // loop_header
      %s11 = sphi 0, %s15
      %p12 = scmp.ge.s32.totalorder %s11, 6
      %s21 = sphi 0, %s23
      %s24 = sphi 0, %s21
      %s25 = sphi 0, %s24
      %s41 = sphi 0, %s25
      %s47 = sphi 0, %s49
      %s50 = sphi 0, %s47
      %s51 = sphi 0, %s50
      %s67 = sphi 0, %s51
      %s73 = sphi 0, %s75
      %s76 = sphi 0, %s73
      %s77 = sphi 0, %s76
      %s93 = sphi 0, %s77
    $region4: #{tpu_custom_call.1} parent=1 // loop_header_branch
      %14 = sbr.rel (%p12) target = $region8
    $region5: #{tpu_custom_call.1} parent=1 // loop_body
      %s16 = ssub.s32 %s11, 1
      %s17 = ssub.s32 %s11, 2
      %s18 = sadd.s32 %s11, 1
      %s19 = ssub.s32 %s11, %s18
      %p20 = scmp.eq.s32.totalorder %s19, 0
      %s22 = sadd.s32 %s21, 1
      %s23 = scalar_select %p20, %s21, %s22
      %p26 = pneg %p20
      %p27 = scmp.eq.s32.totalorder %s11, 3
      %p28 = por %p26, %p27
      %p29 = scmp.ne.s32.totalorder %s21, %s24
      %p30 = scmp.eq.s32.totalorder %s11, 0
      %p31 = por %p29, %p30
      %p32 = scmp.ne.s32.totalorder %s21, %s24
      %p33 = scmp.eq.s32.totalorder %s16, 3
      %p34 = por %p32, %p33
      %p35 = scmp.ne.s32.totalorder %s24, %s25
      %p36 = scmp.eq.s32.totalorder %s16, 0
      %p37 = por %p35, %p36
      %p38 = scmp.ne.s32.totalorder %s24, %s25
      %p39 = scmp.eq.s32.totalorder %s17, 3
      %p40 = por %p38, %p39
      %p42 = scmp.ne.s32.totalorder %s25, %s41
      %p43 = scmp.eq.s32.totalorder %s17, 0
      %p44 = por %p42, %p43
      %s45 = ssub.s32 %s11, %s18
      %p46 = scmp.eq.s32.totalorder %s45, 0
      %s48 = sadd.s32 %s47, 1
      %s49 = scalar_select %p46, %s47, %s48
      %p52 = pneg %p46
      %p53 = scmp.eq.s32.totalorder %s11, 3
      %p54 = por %p52, %p53
      %p55 = scmp.ne.s32.totalorder %s47, %s50
      %p56 = scmp.eq.s32.totalorder %s11, 0
      %p57 = por %p55, %p56
      %p58 = scmp.ne.s32.totalorder %s47, %s50
      %p59 = scmp.eq.s32.totalorder %s16, 3
      %p60 = por %p58, %p59
      %p61 = scmp.ne.s32.totalorder %s50, %s51
      %p62 = scmp.eq.s32.totalorder %s16, 0
      %p63 = por %p61, %p62
      %p64 = scmp.ne.s32.totalorder %s50, %s51
      %p65 = scmp.eq.s32.totalorder %s17, 3
      %p66 = por %p64, %p65
      %p68 = scmp.ne.s32.totalorder %s51, %s67
      %p69 = scmp.eq.s32.totalorder %s17, 0
      %p70 = por %p68, %p69
      %s71 = ssub.s32 %s11, %s18
      %p72 = scmp.eq.s32.totalorder %s71, 0
      %s74 = sadd.s32 %s73, 1
      %s75 = scalar_select %p72, %s73, %s74
      %p78 = pneg %p72
      %p79 = scmp.eq.s32.totalorder %s11, 3
      %p80 = por %p78, %p79
      %p81 = scmp.ne.s32.totalorder %s73, %s76
      %p82 = scmp.eq.s32.totalorder %s11, 0
      %p83 = por %p81, %p82
      %p84 = scmp.ne.s32.totalorder %s73, %s76
      %p85 = scmp.eq.s32.totalorder %s16, 3
      %p86 = por %p84, %p85
      %p87 = scmp.ne.s32.totalorder %s76, %s77
      %p88 = scmp.eq.s32.totalorder %s16, 0
      %p89 = por %p87, %p88
      %p90 = scmp.ne.s32.totalorder %s76, %s77
      %p91 = scmp.eq.s32.totalorder %s17, 3
      %p92 = por %p90, %p91
      %p94 = scmp.ne.s32.totalorder %s77, %s93
      %p95 = scmp.eq.s32.totalorder %s17, 0
      %p96 = por %p94, %p95
      %p97 = scmp.le.s32.totalorder 1, %s11
      %p98 = scmp.lt.s32.totalorder %s11, 5
      %p99 = pnand %p97, %p98
      %p100 = pneg %p99
      // Predicated region
      $region9: #{tpu_custom_call.1} parent=5 // pred_check
        _
      $region10: #{tpu_custom_call.1} parent=5 // pred_check_branch
        %102 = sbr.rel (%p99) target = $region12
      $region11: #{tpu_custom_call.1} parent=5 // pred_region
        %s103 = ssub.s32 %s11, 1
      $region12: #{tpu_custom_call.1} parent=5 // pred_fallthru
        _
      %p104 = scmp.lt.s32.totalorder %s11, 4
      // Predicated region
      $region13: #{tpu_custom_call.1} parent=5 // pred_check
        %p105 = pneg %p104
      $region14: #{tpu_custom_call.1} parent=5 // pred_check_branch
        %107 = sbr.rel (%p105) target = $region16
      $region15: #{tpu_custom_call.1} parent=5 // pred_region
        // Predicated region
        $region17: #{tpu_custom_call.1} parent=15 // pred_check
          %p108 = pneg %p31
        $region18: #{tpu_custom_call.1} parent=15 // pred_check_branch
          %110 = sbr.rel (%p108) target = $region20
        $region19: #{tpu_custom_call.1} parent=15 // pred_region
          %s111 = smul.u32 2, %s11
          %p112 = scmp.lt.s32.totalorder %s111, 7
          %s113 = scalar_select %p112, %s111, 7
          %s114 = smul.addr %s113, 8
          %s115 = scalar_lea.vmem %s0, %s114
          %s116 = smul.u32 2, %s11
        $region20: #{tpu_custom_call.1} parent=15 // pred_fallthru
          _
        // Predicated region
        $region21: #{tpu_custom_call.1} parent=15 // pred_check
          %p117 = pneg %p57
        $region22: #{tpu_custom_call.1} parent=15 // pred_check_branch
          %119 = sbr.rel (%p117) target = $region24
        $region23: #{tpu_custom_call.1} parent=15 // pred_region
          %s120 = smul.u32 2, %s11
          %p121 = scmp.lt.s32.totalorder %s120, 7
          %s122 = scalar_select %p121, %s120, 7
          %s123 = smul.addr %s122, 8
          %s124 = scalar_lea.vmem %s1, %s123
          %s125 = smul.u32 2, %s11
        $region24: #{tpu_custom_call.1} parent=15 // pred_fallthru
          _
      $region16: #{tpu_custom_call.1} parent=5 // pred_fallthru
        _
      %p126 = scmp.le.s32.totalorder 1, %s11
      %p127 = scmp.lt.s32.totalorder %s11, 5
      %p128 = pnand %p126, %p127
      %p129 = pneg %p128
      // Predicated region
      $region25: #{tpu_custom_call.1} parent=5 // pred_check
        _
      $region26: #{tpu_custom_call.1} parent=5 // pred_check_branch
        %131 = sbr.rel (%p128) target = $region28
      $region27: #{tpu_custom_call.1} parent=5 // pred_region
        %s132 = ssub.s32 %s11, 1
        %s133 = smul.u32 2, %s16
        %p134 = scmp.lt.s32.totalorder %s133, 7
        %s135 = scalar_select %p134, %s133, 7
        %s136 = smul.addr %s135, 8
        %s137 = scalar_lea.vmem %s0, %s136
        %p138 = pneg %p37
        %p139 = pneg %p34
        %s140 = smul.u32 2, %s16
        %p141 = scmp.lt.s32.totalorder %s140, 7
        %s142 = scalar_select %p141, %s140, 7
        %s143 = smul.addr %s142, 8
        %s144 = scalar_lea.vmem %s1, %s143
        %p145 = pneg %p63
        %p146 = pneg %p60
        %p147 = pneg %p89
        %p148 = pneg %p86
        %s149 = sand.u32 %s76, 1
        %s150 = scalar_lea.sflag [#allocation3], %s149
        %s151 = sand.u32 %s76, 1
        %s152 = smul.addr %s151, 16
        %s153 = scalar_lea.vmem [#allocation2], %s152
        %s154 = smul.u32 2, %s16
        %p155 = scmp.lt.s32.totalorder %s154, 7
        %s156 = scalar_select %p155, %s154, 7
        %s157 = smul.addr %s156, 8
        %s158 = scalar_lea.vmem %s0, %s157
        %s159 = smul.u32 2, %s16
        %s160 = smul.u32 2, %s16
        %p161 = scmp.lt.s32.totalorder %s160, 7
        %s162 = scalar_select %p161, %s160, 7
        %s163 = smul.addr %s162, 8
        %s164 = scalar_lea.vmem %s1, %s163
        %s165 = smul.u32 2, %s16
        %s166 = smul.u32 2, %s16
        %v167 = vld [vmem:[%s164] sm:$0xff]
        %v168 = vld [vmem:[%s164 + $0x8] sm:$0xff]
        %171 = vrot.lane.b32.xlu0 %v167, 32
        %v172 = vpop.permute.xlu0 %171
        %173 = vrot.lane.b32.xlu0 %v168, 32
        %v174 = vpop.permute.xlu0 %173
        %vm177 = vcmask 261120
        %v178 = vsel %vm177, %v167, %v172
        %v179 = vsel %vm177, %v168, %v174
        %v180 = vld [vmem:[%s158] sm:$0xff]
        %v181 = vld [vmem:[%s158 + $0x8] sm:$0xff]
        %v182 = vadd.f32 %v180, %v178
        %v183 = vadd.f32 %v181, %v179
        %vm184 = vcmask 523264
        %185 = vst.msk [vmem:[%s153] sm:$0xff] %vm184, %v182
        %186 = vst.msk [vmem:[%s153 + $0x8] sm:$0xff] %vm184, %v183
        %s187 = sand.u32 %s76, 1
        %s188 = scalar_lea.sflag [#allocation3], %s187
        %s189 = sand.u32 %s76, 1
        %s190 = smul.addr %s189, 16
        %s191 = scalar_lea.vmem [#allocation2], %s190
        // Predicated region
        $region29: #{tpu_custom_call.1} parent=27 // pred_check
          %p192 = pneg %p86
        $region30: #{tpu_custom_call.1} parent=27 // pred_check_branch
          %194 = sbr.rel (%p192) target = $region32
        $region31: #{tpu_custom_call.1} parent=27 // pred_region
          %s195 = smul.u32 2, %s16
          %s197 = ssub.s32 256, 256
          %198 = vsyncadd %s188, %s197
          %s199 = smul.addr %s195, 128
          %s200 = scalar_lea.hbm %s2, %s199
          %s201 = sshll.u32 %s191, 4
          %s202 = int_to_ptr.vmem [resolvable:$true] %s201
          %207 = dma.vmem_to_hbm [thread:$0]  %s202, 256, %s200, %s188, 128, 128, 8
        $region32: #{tpu_custom_call.1} parent=27 // pred_fallthru
          _
      $region28: #{tpu_custom_call.1} parent=5 // pred_fallthru
        _
      %p208 = scmp.le.s32.totalorder 2, %s11
      // Predicated region
      $region33: #{tpu_custom_call.1} parent=5 // pred_check
        %p209 = pneg %p208
      $region34: #{tpu_custom_call.1} parent=5 // pred_check_branch
        %211 = sbr.rel (%p209) target = $region36
      $region35: #{tpu_custom_call.1} parent=5 // pred_region
        %s212 = ssub.s32 %s11, 2
        // Predicated region
        $region37: #{tpu_custom_call.1} parent=35 // pred_check
          %p213 = pneg %p92
        $region38: #{tpu_custom_call.1} parent=35 // pred_check_branch
          %215 = sbr.rel (%p213) target = $region40
        $region39: #{tpu_custom_call.1} parent=35 // pred_region
          %s216 = sand.u32 %s77, 1
          %s217 = scalar_lea.sflag [#allocation3], %s216
          %s218 = sand.u32 %s77, 1
          %s219 = smul.addr %s218, 16
          %s220 = scalar_lea.vmem [#allocation2], %s219
          %221 = dma.done %s217, 256
        $region40: #{tpu_custom_call.1} parent=35 // pred_fallthru
          _
      $region36: #{tpu_custom_call.1} parent=5 // pred_fallthru
        _
    $region6: #{tpu_custom_call.1} parent=1 // loop_footer
      %s15 = sadd.s32 1, %s11
    $region7: #{tpu_custom_call.1} parent=1 // loop_footer_branch
      %10 = sbr.rel target = $region3
    $region8: #{tpu_custom_call.1} parent=1 // loop_exit
      _
    %222 = vsyncpa [#allocation3], 1
    %s223 = scalar_lea.sflag [#allocation3], 1
    %224 = vsyncpa %s223, 1

</llo_original>
